<compile_context>
chip_gen: v7x
topology: tpu7x:2x2x1
jax: 0.10.0
libtpu: 0.0.40
codegen_flags: <defaults>
</compile_context>

<pallas_src>
import functools
import math

import jax
import jax.numpy as jnp
import numpy as np
from jax.experimental import pallas as pl
from jax.experimental.pallas import tpu as pltpu


# ------------------------------ fused Pallas kernel ------------------------------ #

def _fft_attn_kernel(x_ref, wq_ref, wk_ref, wv_ref, bq_ref, bk_ref, bv_ref,
                     wo_ref, bo_ref, fwd_ref, inv_ref, filt_ref, o_ref,
                     *, block_b, seq_len, d_model, f_pad):
    BT, S, D, F = block_b, seq_len, d_model, f_pad

    x = x_ref[...]                                      # (BT*S, D) f32, token-major

    # QKV projections: separate lane-aligned weights, batch-blocked M = BT*S (MXU).
    q = jnp.dot(x, wq_ref[...], preferred_element_type=jnp.float32) + bq_ref[...]
    k = jnp.dot(x, wk_ref[...], preferred_element_type=jnp.float32) + bk_ref[...]
    v = jnp.dot(x, wv_ref[...], preferred_element_type=jnp.float32) + bv_ref[...]

    # Relayout token-major (BT*S, D) -> sequence-major (S, BT*D): sublane-aligned row
    # slices (S % 8 == 0) concatenated along lanes.  One DFT matmul then covers all
    # BT batches / H heads in its N dimension.
    def to_seq_major(t):
        return jnp.concatenate([t[b * S:(b + 1) * S, :] for b in range(BT)], axis=1)

    q_sm = to_seq_major(q).astype(jnp.bfloat16)         # (S, BT*D)
    k_sm = to_seq_major(k).astype(jnp.bfloat16)

    # Forward rFFT: stacked [cos; sin] basis -> one bf16 MXU matmul per operand.
    gq = jnp.dot(fwd_ref[...], q_sm, preferred_element_type=jnp.float32)   # (2F, BT*D)
    gk = jnp.dot(fwd_ref[...], k_sm, preferred_element_type=jnp.float32)
    cq, sq = gq[:F, :], gq[F:, :]                       # sublane-aligned halves (F % 8 == 0)
    ck, sk = gk[:F, :], gk[F:, :]

    # Q * conj(K) on the half spectrum, with Q = cq - i*sq and K = ck - i*sk.
    re_x = cq * ck + sq * sk
    im_x = cq * sk - sq * ck

    # Inverse rFFT: single matmul with [w*cos | -w*sin]/S against stacked [re; im]
    # (symmetry weights and the 1/S scaling are folded into the basis on the host).
    spec = jnp.concatenate([re_x, im_x], axis=0).astype(jnp.bfloat16)       # (2F, BT*D)
    corr = jnp.dot(inv_ref[...], spec, preferred_element_type=jnp.float32)  # (S, BT*D)

    # Per-head sigmoid(freq_filter)*scale (constant over frequency, so applying it in
    # the time domain is exact), then softmax over the sequence axis (axis 0).
    logits = corr * filt_ref[...]
    m = jnp.max(logits, axis=0, keepdims=True)
    e = jnp.exp(logits - m)
    attn = e * pl.reciprocal(jnp.sum(e, axis=0, keepdims=True), approx=True)

    # Gate v (token-major) and project out; store sequence-major -> lane-dense vst.
    attn_tok = jnp.concatenate([attn[:, b * D:(b + 1) * D] for b in range(BT)], axis=0)
    head_out = attn_tok * v                             # (BT*S, D)
    y = jnp.dot(head_out, wo_ref[...], preferred_element_type=jnp.float32) + bo_ref[...]
    o_ref[...] = to_seq_major(y).astype(o_ref.dtype)


# --------------------------------- module forward -------------------------------- #

def make_fft_attention(params, seq_len, *, block_b=2, dft_dtype=jnp.bfloat16):
    """One-time host prep (rFFT basis, filter, weight split) + jitted Pallas forward."""
    D, three_d = params["w_qkv"].shape
    assert three_d == 3 * D
    H = int(params["n_heads"])
    Hd = D // H
    S = int(seq_len)
    BT = int(block_b)
    scale = 1.0 / math.sqrt(Hd)

    # rFFT basis (conjugate symmetry of real q/k): F = S//2 + 1 bins, padded to a
    # multiple of 8 so the [cos; sin] row halves stay sublane-aligned.
    F = S // 2 + 1
    F_pad = ((F + 7) // 8) * 8
    n = np.arange(S)
    ang = 2.0 * np.pi * np.outer(np.arange(F), n) / S            # (F, S)
    fwd = np.zeros((2 * F_pad, S), np.float32)
    fwd[:F] = np.cos(ang)
    fwd[F_pad:F_pad + F] = np.sin(ang)
    w = np.full((F,), 2.0, np.float32)                           # symmetry weights
    w[0] = 1.0
    if S % 2 == 0:
        w[F - 1] = 1.0                                           # Nyquist bin
    inv = np.zeros((S, 2 * F_pad), np.float32)
    inv[:, :F] = np.cos(ang).T * (w / S)
    inv[:, F_pad:F_pad + F] = -np.sin(ang).T * (w / S)
    fwd = jnp.asarray(fwd, dft_dtype)
    inv = jnp.asarray(inv, dft_dtype)

    # sigmoid(freq_filter[h]) * scale per lane (head-major), tiled across BT batches.
    filt = np.repeat(np.asarray(jax.nn.sigmoid(params["freq_filter"]),
                                dtype=np.float32), Hd) * np.float32(scale)
    filt = jnp.asarray(np.tile(filt, BT).reshape(1, BT * D), jnp.float32)

    # Lane-aligned per-projection weights / biases (one-time split on host).
    w_qkv, b_qkv = params["w_qkv"], params["b_qkv"]
    w_q, w_k, w_v = w_qkv[:, :D], w_qkv[:, D:2 * D], w_qkv[:, 2 * D:]
    b_q = b_qkv[:D].reshape(1, D)
    b_k = b_qkv[D:2 * D].reshape(1, D)
    b_v = b_qkv[2 * D:].reshape(1, D)
    w_o = params["w_out"]
    b_o = params["b_out"].reshape(1, D)

    kernel = functools.partial(_fft_attn_kernel, block_b=BT, seq_len=S,
                               d_model=D, f_pad=F_pad)

    def const2d(shape):
        # Constant block index -> DMA'd once, not re-fetched across grid steps.
        # (At large S these blocks could additionally be single-buffered via
        #  pipeline_mode=pl.Buffered(1) to halve their VMEM footprint on v7x.)
        return pl.BlockSpec(shape, lambda j: (0, 0))

    def forward(x):
        B = x.shape[0]
        assert x.shape == (B, S, D) and B % BT == 0, (x.shape, S, D, BT)
        x_tok = x.reshape(B * S, D)                    # token-major input slab
        out_sm = pl.pallas_call(
            kernel,
            out_shape=jax.ShapeDtypeStruct((S, B * D), x.dtype),   # sequence-major
            grid=(B // BT,),
            in_specs=[
                pl.BlockSpec((BT * S, D), lambda j: (j, 0)),        # x
                const2d((D, D)), const2d((D, D)), const2d((D, D)),  # w_q, w_k, w_v
                const2d((1, D)), const2d((1, D)), const2d((1, D)),  # b_q, b_k, b_v
                const2d((D, D)), const2d((1, D)),                   # w_out, b_out
                const2d((2 * F_pad, S)),                            # fwd rFFT basis
                const2d((S, 2 * F_pad)),                            # inv rFFT basis
                const2d((1, BT * D)),                               # filter * scale
            ],
            out_specs=pl.BlockSpec((S, BT * D), lambda j: (0, j)),  # lane-dense store
            compiler_params=pltpu.CompilerParams(
                dimension_semantics=("parallel",),   # batch blocks -> v7x megacore
                vmem_limit_bytes=32 * 1024 * 1024),
        )(x_tok, w_q, w_k, w_v, b_q, b_k, b_v, w_o, b_o, fwd, inv, filt)
        # Layout plumbing back to (B, S, D) happens in XLA, outside the kernel.
        return out_sm.reshape(S, B, D).transpose(1, 0, 2)

    return jax.jit(forward)


# ---------------------------- pure-JAX reference (FFT) --------------------------- #

def reference_forward(params, x):
    B, S, D = x.shape
    H = params["n_heads"]
    Hd = D // H
    scale = 1.0 / math.sqrt(Hd)
    qkv = jnp.einsum("bsd,df->bsf", x, params["w_qkv"],
                     precision=jax.lax.Precision.HIGHEST) + params["b_qkv"]
    q, k, v = jnp.split(qkv, 3, axis=-1)

    def split_heads(t):
        return t.reshape(B, S, H, Hd).transpose(0, 2, 1, 3)

    q, k, v = split_heads(q), split_heads(k), split_heads(v)
    q_fft = jnp.fft.fft(q.astype(jnp.complex64), axis=2)
    k_fft = jnp.fft.fft(k.astype(jnp.complex64), axis=2)
    fw = jax.nn.sigmoid(params["freq_filter"])[None, :, None, None]
    attn = jnp.fft.ifft(q_fft * jnp.conj(k_fft) * fw, axis=2).real
    attn = jax.nn.softmax(attn * scale, axis=2)
    out = (attn * v).transpose(0, 2, 1, 3).reshape(B, S, D)
    return jnp.einsum("bsd,de->bse", out, params["w_out"],
                      precision=jax.lax.Precision.HIGHEST) + params["b_out"]


# -------------------------------------- main ------------------------------------- #

if __name__ == "__main__":
    # Small demo shapes: d_model=32, 4 heads (head_dim=8), seq=8, batch=8.
    B, S, D, H = 8, 8, 32, 4
    BT = 4   # batches per grid step: BT*D = 128 lanes (dense stores) and
             # grid = (2,) -> even "parallel" split across v7x's two TensorCores.

    key = jax.random.PRNGKey(0)
    k1, k2, k3, k4, kx = jax.random.split(key, 5)
    bound = 1.0 / math.sqrt(D)   # nn.Linear default init bound
    params = dict(
        n_heads=H,
        w_qkv=jax.random.uniform(k1, (D, 3 * D), jnp.float32, -bound, bound),
        b_qkv=jax.random.uniform(k2, (3 * D,), jnp.float32, -bound, bound),
        w_out=jax.random.uniform(k3, (D, D), jnp.float32, -bound, bound),
        b_out=jax.random.uniform(k4, (D,), jnp.float32, -bound, bound),
        freq_filter=jnp.full((H,), 0.5, jnp.float32),   # torch.ones(n_heads) * 0.5
    )
    x = jax.random.normal(kx, (B, S, D), jnp.float32)

    fft_attention = make_fft_attention(params, seq_len=S, block_b=BT)
    out = jax.block_until_ready(fft_attention(x))
    ref = jax.block_until_ready(reference_forward(params, x))

    assert out.shape == (B, S, D)
    # bf16 DFT operands (with f32 MXU accumulation) need slightly looser tolerance.
    np.testing.assert_allclose(np.asarray(out), np.asarray(ref), rtol=3e-2, atol=3e-2)
    print("KERNEL_OK")
</pallas_src>

<mosaic_0001>
module attributes {stable_mosaic.version = 11 : i64} {
  func.func @_fft_attn_kernel(%arg0: i32, %arg1: memref<32x32xf32, #tpu.memory_space<vmem>>, %arg2: memref<32x32xf32, #tpu.memory_space<vmem>>, %arg3: memref<32x32xf32, #tpu.memory_space<vmem>>, %arg4: memref<32x32xf32, #tpu.memory_space<vmem>>, %arg5: memref<1x32xf32, #tpu.memory_space<vmem>>, %arg6: memref<1x32xf32, #tpu.memory_space<vmem>>, %arg7: memref<1x32xf32, #tpu.memory_space<vmem>>, %arg8: memref<32x32xf32, #tpu.memory_space<vmem>>, %arg9: memref<1x32xf32, #tpu.memory_space<vmem>>, %arg10: memref<16x8xbf16, #tpu.memory_space<vmem>>, %arg11: memref<8x16xbf16, #tpu.memory_space<vmem>>, %arg12: memref<1x128xf32, #tpu.memory_space<vmem>>, %arg13: memref<8x128xf32, #tpu.memory_space<vmem>>) attributes {dimension_semantics = [#tpu.dimension_semantics<parallel>], iteration_bounds = array<i64: 2>, scalar_prefetch = 0 : i64, scratch_operands = 0 : i64, tpu.core_type = #tpu.core_type<tc>, window_params = [{transform_indices = @transform_0, window_bounds = array<i64: 32, 32>}, {pipeline_mode = #tpu.pipeline_mode<synchronous>, transform_indices = @transform_1, window_bounds = array<i64: 32, 32>}, {pipeline_mode = #tpu.pipeline_mode<synchronous>, transform_indices = @transform_2, window_bounds = array<i64: 32, 32>}, {pipeline_mode = #tpu.pipeline_mode<synchronous>, transform_indices = @transform_3, window_bounds = array<i64: 32, 32>}, {pipeline_mode = #tpu.pipeline_mode<synchronous>, transform_indices = @transform_4, window_bounds = array<i64: 1, 32>}, {pipeline_mode = #tpu.pipeline_mode<synchronous>, transform_indices = @transform_5, window_bounds = array<i64: 1, 32>}, {pipeline_mode = #tpu.pipeline_mode<synchronous>, transform_indices = @transform_6, window_bounds = array<i64: 1, 32>}, {pipeline_mode = #tpu.pipeline_mode<synchronous>, transform_indices = @transform_7, window_bounds = array<i64: 32, 32>}, {pipeline_mode = #tpu.pipeline_mode<synchronous>, transform_indices = @transform_8, window_bounds = array<i64: 1, 32>}, {pipeline_mode = #tpu.pipeline_mode<synchronous>, transform_indices = @transform_9, window_bounds = array<i64: 16, 8>}, {pipeline_mode = #tpu.pipeline_mode<synchronous>, transform_indices = @transform_10, window_bounds = array<i64: 8, 16>}, {pipeline_mode = #tpu.pipeline_mode<synchronous>, transform_indices = @transform_11, window_bounds = array<i64: 1, 128>}, {transform_indices = @transform_12, window_bounds = array<i64: 8, 128>}]} {
    %c0 = arith.constant 0 : index
    %c0_0 = arith.constant 0 : index
    %0 = vector.load %arg1[%c0, %c0_0] : memref<32x32xf32, #tpu.memory_space<vmem>>, vector<32x32xf32>
    %c0_1 = arith.constant 0 : index
    %c0_2 = arith.constant 0 : index
    %1 = vector.load %arg2[%c0_1, %c0_2] : memref<32x32xf32, #tpu.memory_space<vmem>>, vector<32x32xf32>
    %cst = arith.constant dense<0.000000e+00> : vector<32x32xf32>
    %2 = tpu.matmul %0, %1, %cst {dimension_numbers = #tpu.dot_dimension_numbers<[1], [0], [0], [1], [0, 0, 1, 1], [], []>} : vector<32x32xf32>, vector<32x32xf32>, vector<32x32xf32> -> vector<32x32xf32>
    %c0_3 = arith.constant 0 : index
    %c0_4 = arith.constant 0 : index
    %3 = vector.load %arg5[%c0_3, %c0_4] : memref<1x32xf32, #tpu.memory_space<vmem>>, vector<1x32xf32>
    %4 = vector.broadcast %3 : vector<1x32xf32> to vector<32x32xf32>
    %5 = arith.addf %2, %4 : vector<32x32xf32>
    %c0_5 = arith.constant 0 : index
    %c0_6 = arith.constant 0 : index
    %6 = vector.load %arg3[%c0_5, %c0_6] : memref<32x32xf32, #tpu.memory_space<vmem>>, vector<32x32xf32>
    %cst_7 = arith.constant dense<0.000000e+00> : vector<32x32xf32>
    %7 = tpu.matmul %0, %6, %cst_7 {dimension_numbers = #tpu.dot_dimension_numbers<[1], [0], [0], [1], [0, 0, 1, 1], [], []>} : vector<32x32xf32>, vector<32x32xf32>, vector<32x32xf32> -> vector<32x32xf32>
    %c0_8 = arith.constant 0 : index
    %c0_9 = arith.constant 0 : index
    %8 = vector.load %arg6[%c0_8, %c0_9] : memref<1x32xf32, #tpu.memory_space<vmem>>, vector<1x32xf32>
    %9 = vector.broadcast %8 : vector<1x32xf32> to vector<32x32xf32>
    %10 = arith.addf %7, %9 : vector<32x32xf32>
    %c0_10 = arith.constant 0 : index
    %c0_11 = arith.constant 0 : index
    %11 = vector.load %arg4[%c0_10, %c0_11] : memref<32x32xf32, #tpu.memory_space<vmem>>, vector<32x32xf32>
    %cst_12 = arith.constant dense<0.000000e+00> : vector<32x32xf32>
    %12 = tpu.matmul %0, %11, %cst_12 {dimension_numbers = #tpu.dot_dimension_numbers<[1], [0], [0], [1], [0, 0, 1, 1], [], []>} : vector<32x32xf32>, vector<32x32xf32>, vector<32x32xf32> -> vector<32x32xf32>
    %c0_13 = arith.constant 0 : index
    %c0_14 = arith.constant 0 : index
    %13 = vector.load %arg7[%c0_13, %c0_14] : memref<1x32xf32, #tpu.memory_space<vmem>>, vector<1x32xf32>
    %14 = vector.broadcast %13 : vector<1x32xf32> to vector<32x32xf32>
    %15 = arith.addf %12, %14 : vector<32x32xf32>
    %16 = vector.extract_strided_slice %5 {offsets = [0, 0], sizes = [8, 32], strides = [1, 1]} : vector<32x32xf32> to vector<8x32xf32>
    %17 = vector.extract_strided_slice %5 {offsets = [8, 0], sizes = [8, 32], strides = [1, 1]} : vector<32x32xf32> to vector<8x32xf32>
    %18 = vector.extract_strided_slice %5 {offsets = [16, 0], sizes = [8, 32], strides = [1, 1]} : vector<32x32xf32> to vector<8x32xf32>
    %19 = vector.extract_strided_slice %5 {offsets = [24, 0], sizes = [8, 32], strides = [1, 1]} : vector<32x32xf32> to vector<8x32xf32>
    %20 = tpu.concatenate %16, %17, %18, %19 in 1 : vector<8x32xf32>, vector<8x32xf32>, vector<8x32xf32>, vector<8x32xf32> -> vector<8x128xf32>
    %21 = arith.truncf %20 : vector<8x128xf32> to vector<8x128xbf16>
    %22 = vector.extract_strided_slice %10 {offsets = [0, 0], sizes = [8, 32], strides = [1, 1]} : vector<32x32xf32> to vector<8x32xf32>
    %23 = vector.extract_strided_slice %10 {offsets = [8, 0], sizes = [8, 32], strides = [1, 1]} : vector<32x32xf32> to vector<8x32xf32>
    %24 = vector.extract_strided_slice %10 {offsets = [16, 0], sizes = [8, 32], strides = [1, 1]} : vector<32x32xf32> to vector<8x32xf32>
    %25 = vector.extract_strided_slice %10 {offsets = [24, 0], sizes = [8, 32], strides = [1, 1]} : vector<32x32xf32> to vector<8x32xf32>
    %26 = tpu.concatenate %22, %23, %24, %25 in 1 : vector<8x32xf32>, vector<8x32xf32>, vector<8x32xf32>, vector<8x32xf32> -> vector<8x128xf32>
    %27 = arith.truncf %26 : vector<8x128xf32> to vector<8x128xbf16>
    %c0_15 = arith.constant 0 : index
    %c0_16 = arith.constant 0 : index
    %28 = vector.load %arg10[%c0_15, %c0_16] : memref<16x8xbf16, #tpu.memory_space<vmem>>, vector<16x8xbf16>
    %cst_17 = arith.constant dense<0.000000e+00> : vector<16x128xf32>
    %29 = tpu.matmul %28, %21, %cst_17 {dimension_numbers = #tpu.dot_dimension_numbers<[1], [0], [0], [1], [0, 0, 1, 1], [], []>} : vector<16x8xbf16>, vector<8x128xbf16>, vector<16x128xf32> -> vector<16x128xf32>
    %c0_18 = arith.constant 0 : index
    %c0_19 = arith.constant 0 : index
    %30 = vector.load %arg10[%c0_18, %c0_19] : memref<16x8xbf16, #tpu.memory_space<vmem>>, vector<16x8xbf16>
    %cst_20 = arith.constant dense<0.000000e+00> : vector<16x128xf32>
    %31 = tpu.matmul %30, %27, %cst_20 {dimension_numbers = #tpu.dot_dimension_numbers<[1], [0], [0], [1], [0, 0, 1, 1], [], []>} : vector<16x8xbf16>, vector<8x128xbf16>, vector<16x128xf32> -> vector<16x128xf32>
    %32 = vector.extract_strided_slice %29 {offsets = [0, 0], sizes = [8, 128], strides = [1, 1]} : vector<16x128xf32> to vector<8x128xf32>
    %33 = vector.extract_strided_slice %29 {offsets = [8, 0], sizes = [8, 128], strides = [1, 1]} : vector<16x128xf32> to vector<8x128xf32>
    %34 = vector.extract_strided_slice %31 {offsets = [0, 0], sizes = [8, 128], strides = [1, 1]} : vector<16x128xf32> to vector<8x128xf32>
    %35 = vector.extract_strided_slice %31 {offsets = [8, 0], sizes = [8, 128], strides = [1, 1]} : vector<16x128xf32> to vector<8x128xf32>
    %36 = arith.mulf %32, %34 : vector<8x128xf32>
    %37 = arith.mulf %33, %35 : vector<8x128xf32>
    %38 = arith.addf %36, %37 : vector<8x128xf32>
    %39 = arith.mulf %32, %35 : vector<8x128xf32>
    %40 = arith.mulf %33, %34 : vector<8x128xf32>
    %41 = arith.subf %39, %40 : vector<8x128xf32>
    %42 = tpu.concatenate %38, %41 in 0 : vector<8x128xf32>, vector<8x128xf32> -> vector<16x128xf32>
    %43 = arith.truncf %42 : vector<16x128xf32> to vector<16x128xbf16>
    %c0_21 = arith.constant 0 : index
    %c0_22 = arith.constant 0 : index
    %44 = vector.load %arg11[%c0_21, %c0_22] : memref<8x16xbf16, #tpu.memory_space<vmem>>, vector<8x16xbf16>
    %cst_23 = arith.constant dense<0.000000e+00> : vector<8x128xf32>
    %45 = tpu.matmul %44, %43, %cst_23 {dimension_numbers = #tpu.dot_dimension_numbers<[1], [0], [0], [1], [0, 0, 1, 1], [], []>} : vector<8x16xbf16>, vector<16x128xbf16>, vector<8x128xf32> -> vector<8x128xf32>
    %c0_24 = arith.constant 0 : index
    %c0_25 = arith.constant 0 : index
    %46 = vector.load %arg12[%c0_24, %c0_25] : memref<1x128xf32, #tpu.memory_space<vmem>>, vector<1x128xf32>
    %47 = vector.broadcast %46 : vector<1x128xf32> to vector<8x128xf32>
    %48 = arith.mulf %45, %47 : vector<8x128xf32>
    %cst_26 = arith.constant dense<0xFF800000> : vector<128xf32>
    %49 = vector.multi_reduction <maximumf>, %48, %cst_26 [0] : vector<8x128xf32> to vector<128xf32>
    %50 = vector.shape_cast %49 : vector<128xf32> to vector<1x128xf32>
    %51 = vector.broadcast %50 : vector<1x128xf32> to vector<8x128xf32>
    %52 = arith.subf %48, %51 : vector<8x128xf32>
    %53 = math.exp %52 : vector<8x128xf32>
    %cst_27 = arith.constant dense<0.000000e+00> : vector<128xf32>
    %54 = vector.multi_reduction <add>, %53, %cst_27 [0] : vector<8x128xf32> to vector<128xf32>
    %55 = vector.shape_cast %54 : vector<128xf32> to vector<1x128xf32>
    %56 = tpu.reciprocal %55 {approx = true} : vector<1x128xf32> -> vector<1x128xf32>
    %57 = vector.broadcast %56 : vector<1x128xf32> to vector<8x128xf32>
    %58 = arith.mulf %53, %57 : vector<8x128xf32>
    %59 = vector.extract_strided_slice %58 {offsets = [0, 0], sizes = [8, 32], strides = [1, 1]} : vector<8x128xf32> to vector<8x32xf32>
    %60 = vector.extract_strided_slice %58 {offsets = [0, 32], sizes = [8, 32], strides = [1, 1]} : vector<8x128xf32> to vector<8x32xf32>
    %61 = vector.extract_strided_slice %58 {offsets = [0, 64], sizes = [8, 32], strides = [1, 1]} : vector<8x128xf32> to vector<8x32xf32>
    %62 = vector.extract_strided_slice %58 {offsets = [0, 96], sizes = [8, 32], strides = [1, 1]} : vector<8x128xf32> to vector<8x32xf32>
    %63 = tpu.concatenate %59, %60, %61, %62 in 0 : vector<8x32xf32>, vector<8x32xf32>, vector<8x32xf32>, vector<8x32xf32> -> vector<32x32xf32>
    %64 = arith.mulf %63, %15 : vector<32x32xf32>
    %c0_28 = arith.constant 0 : index
    %c0_29 = arith.constant 0 : index
    %65 = vector.load %arg8[%c0_28, %c0_29] : memref<32x32xf32, #tpu.memory_space<vmem>>, vector<32x32xf32>
    %cst_30 = arith.constant dense<0.000000e+00> : vector<32x32xf32>
    %66 = tpu.matmul %64, %65, %cst_30 {dimension_numbers = #tpu.dot_dimension_numbers<[1], [0], [0], [1], [0, 0, 1, 1], [], []>} : vector<32x32xf32>, vector<32x32xf32>, vector<32x32xf32> -> vector<32x32xf32>
    %c0_31 = arith.constant 0 : index
    %c0_32 = arith.constant 0 : index
    %67 = vector.load %arg9[%c0_31, %c0_32] : memref<1x32xf32, #tpu.memory_space<vmem>>, vector<1x32xf32>
    %68 = vector.broadcast %67 : vector<1x32xf32> to vector<32x32xf32>
    %69 = arith.addf %66, %68 : vector<32x32xf32>
    %70 = vector.extract_strided_slice %69 {offsets = [0, 0], sizes = [8, 32], strides = [1, 1]} : vector<32x32xf32> to vector<8x32xf32>
    %71 = vector.extract_strided_slice %69 {offsets = [8, 0], sizes = [8, 32], strides = [1, 1]} : vector<32x32xf32> to vector<8x32xf32>
    %72 = vector.extract_strided_slice %69 {offsets = [16, 0], sizes = [8, 32], strides = [1, 1]} : vector<32x32xf32> to vector<8x32xf32>
    %73 = vector.extract_strided_slice %69 {offsets = [24, 0], sizes = [8, 32], strides = [1, 1]} : vector<32x32xf32> to vector<8x32xf32>
    %74 = tpu.concatenate %70, %71, %72, %73 in 1 : vector<8x32xf32>, vector<8x32xf32>, vector<8x32xf32>, vector<8x32xf32> -> vector<8x128xf32>
    %c0_33 = arith.constant 0 : index
    %c0_34 = arith.constant 0 : index
    %75 = vector.load %arg13[%c0_33, %c0_34] : memref<8x128xf32, #tpu.memory_space<vmem>>, vector<8x128xf32>
    tpu.vector_store %arg13[%c0_33, %c0_34], %74 {strides = array<i32>} : memref<8x128xf32, #tpu.memory_space<vmem>>, vector<8x128xf32>,
    return
  }
  func.func @transform_0(%arg0: i32) -> (i32, i32) {
    %c0_i32 = arith.constant 0 : i32
    %c0_i32_0 = arith.constant 0 : i32
    return %arg0, %c0_i32 : i32, i32
  }
  func.func @transform_1(%arg0: i32) -> (i32, i32) {
    %c0_i32 = arith.constant 0 : i32
    %c0_i32_0 = arith.constant 0 : i32
    %c0_i32_1 = arith.constant 0 : i32
    return %c0_i32, %c0_i32_0 : i32, i32
  }
  func.func @transform_2(%arg0: i32) -> (i32, i32) {
    %c0_i32 = arith.constant 0 : i32
    %c0_i32_0 = arith.constant 0 : i32
    %c0_i32_1 = arith.constant 0 : i32
    return %c0_i32, %c0_i32_0 : i32, i32
  }
  func.func @transform_3(%arg0: i32) -> (i32, i32) {
    %c0_i32 = arith.constant 0 : i32
    %c0_i32_0 = arith.constant 0 : i32
    %c0_i32_1 = arith.constant 0 : i32
    return %c0_i32, %c0_i32_0 : i32, i32
  }
  func.func @transform_4(%arg0: i32) -> (i32, i32) {
    %c0_i32 = arith.constant 0 : i32
    %c0_i32_0 = arith.constant 0 : i32
    %c0_i32_1 = arith.constant 0 : i32
    return %c0_i32, %c0_i32_0 : i32, i32
  }
  func.func @transform_5(%arg0: i32) -> (i32, i32) {
    %c0_i32 = arith.constant 0 : i32
    %c0_i32_0 = arith.constant 0 : i32
    %c0_i32_1 = arith.constant 0 : i32
    return %c0_i32, %c0_i32_0 : i32, i32
  }
  func.func @transform_6(%arg0: i32) -> (i32, i32) {
    %c0_i32 = arith.constant 0 : i32
    %c0_i32_0 = arith.constant 0 : i32
    %c0_i32_1 = arith.constant 0 : i32
    return %c0_i32, %c0_i32_0 : i32, i32
  }
  func.func @transform_7(%arg0: i32) -> (i32, i32) {
    %c0_i32 = arith.constant 0 : i32
    %c0_i32_0 = arith.constant 0 : i32
    %c0_i32_1 = arith.constant 0 : i32
    return %c0_i32, %c0_i32_0 : i32, i32
  }
  func.func @transform_8(%arg0: i32) -> (i32, i32) {
    %c0_i32 = arith.constant 0 : i32
    %c0_i32_0 = arith.constant 0 : i32
    %c0_i32_1 = arith.constant 0 : i32
    return %c0_i32, %c0_i32_0 : i32, i32
  }
  func.func @transform_9(%arg0: i32) -> (i32, i32) {
    %c0_i32 = arith.constant 0 : i32
    %c0_i32_0 = arith.constant 0 : i32
    %c0_i32_1 = arith.constant 0 : i32
    return %c0_i32, %c0_i32_0 : i32, i32
  }
  func.func @transform_10(%arg0: i32) -> (i32, i32) {
    %c0_i32 = arith.constant 0 : i32
    %c0_i32_0 = arith.constant 0 : i32
    %c0_i32_1 = arith.constant 0 : i32
    return %c0_i32, %c0_i32_0 : i32, i32
  }
  func.func @transform_11(%arg0: i32) -> (i32, i32) {
    %c0_i32 = arith.constant 0 : i32
    %c0_i32_0 = arith.constant 0 : i32
    %c0_i32_1 = arith.constant 0 : i32
    return %c0_i32, %c0_i32_0 : i32, i32
  }
  func.func @transform_12(%arg0: i32) -> (i32, i32) {
    %c0_i32 = arith.constant 0 : i32
    %c0_i32_0 = arith.constant 0 : i32
    return %c0_i32, %arg0 : i32, i32
  }
}

</mosaic_0001>

<llo_original>
// kernel: forward.1
$region0: #{forward.1}
  #allocation0 [shape = 'u32[]', space=smem, size = 0x4, offset = 0x4, fixed_abs, tag = 'smem constant byte address 0x4 - core index']
  #allocation1 [shape = 'u32[144,128]{1,0:T(1,128)}', space=vmem, size = 0x12000, scoped, tag = 'internal scratch']
  %s0 = inlined_call_operand.hbm [shape: f32[64,32], index: 0, kind: input, shape index: {}]
  %s1 = inlined_call_operand.hbm [shape: f32[32,32], index: 1, kind: input, shape index: {}]
  %s2 = inlined_call_operand.hbm [shape: f32[32,32], index: 2, kind: input, shape index: {}]
  %s3 = inlined_call_operand.hbm [shape: f32[32,32], index: 3, kind: input, shape index: {}]
  %s4 = inlined_call_operand.hbm [shape: f32[1,32], index: 4, kind: input, shape index: {}]
  %s5 = inlined_call_operand.hbm [shape: f32[1,32], index: 5, kind: input, shape index: {}]
  %s6 = inlined_call_operand.hbm [shape: f32[1,32], index: 6, kind: input, shape index: {}]
  %s7 = inlined_call_operand.vmem [shape: f32[32,32], index: 7, kind: input, shape index: {}]
  %s8 = inlined_call_operand.vmem [shape: f32[1,32], index: 8, kind: input, shape index: {}]
  %s9 = inlined_call_operand.vmem [shape: bf16[16,8], index: 9, kind: input, shape index: {}]
  %s10 = inlined_call_operand.vmem [shape: bf16[8,16], index: 10, kind: input, shape index: {}]
  %s11 = inlined_call_operand.vmem [shape: f32[1,128], index: 11, kind: input, shape index: {}]
  %s12 = inlined_call_operand.vmem [shape: f32[8,256], index: 12, kind: output, shape index: {}]
  %s13 = sld [smem:[#allocation0]]
  $region109: #{forward.1} parent=0
    _
  %s15 = ssub.s32 1, %s13
  %s16 = scalar_select 0, %s15, %s13
  $region1: #{forward.1} parent=0
    #allocation2 [shape = 'u8[32768]{0}', space=vmem, size = 0x8000, scoped, tag = 'input window, operand 0']
    #allocation3 [shape = 's32[2]{0}', space=sflag, size = 0x8, scoped, tag = 'scoped memory for forward.1']
    #allocation4 [shape = 'u8[16384]{0}', space=vmem, size = 0x4000, scoped, tag = 'input window, operand 1, single buffered']
    #allocation5 [shape = 's32[1]{0}', space=sflag, size = 0x4, scoped, tag = 'scoped memory for forward.1']
    #allocation6 [shape = 'u8[16384]{0}', space=vmem, size = 0x4000, scoped, tag = 'input window, operand 2, single buffered']
    #allocation7 [shape = 'u8[16384]{0}', space=vmem, size = 0x4000, scoped, tag = 'input window, operand 3, single buffered']
    #allocation8 [shape = 's32[1]{0}', space=sflag, size = 0x4, scoped, tag = 'scoped memory for forward.1']
    #allocation9 [shape = 'u8[512]{0}', space=vmem, size = 0x400, scoped, tag = 'input window, operand 4, single buffered']
    #allocation10 [shape = 'u8[512]{0}', space=vmem, size = 0x400, scoped, tag = 'input window, operand 5, single buffered']
    #allocation11 [shape = 's32[1]{0}', space=sflag, size = 0x4, scoped, tag = 'scoped memory for forward.1']
    #allocation12 [shape = 'u8[512]{0}', space=vmem, size = 0x400, scoped, tag = 'input window, operand 6, single buffered']
    %17 = vsyncpa [#allocation3], 0
    %s18 = scalar_lea.sflag [#allocation3], 1
    %19 = vsyncpa %s18, 0
    %20 = vsyncpa [#allocation5], 0
    %21 = vsyncpa [#allocation8], 0
    %22 = vsyncpa [#allocation11], 0
    loop: start=0, step=1, limit=4
    $region2: #{forward.1} parent=1 // loop_pre_header
      _
    $region3: #{forward.1} parent=1 // loop_header
      %s24 = sphi 0, %s28
      %p25 = scmp.ge.s32.totalorder %s24, 4
      %s34 = sphi 0, %s36
      %s37 = sphi 0, %s34
      %s38 = sphi 0, %s37
      %s54 = sphi 0, %s38
      %s58 = sphi 0, %s58
      %s60 = sphi 0, %s58
      %s61 = sphi 0, %s60
      %s75 = sphi 0, %s61
      %s79 = sphi 0, %s79
      %s81 = sphi 0, %s79
      %s82 = sphi 0, %s81
      %s96 = sphi 0, %s82
      %s100 = sphi 0, %s100
      %s102 = sphi 0, %s100
      %s103 = sphi 0, %s102
      %s117 = sphi 0, %s103
      %s121 = sphi 0, %s121
      %s123 = sphi 0, %s121
      %s124 = sphi 0, %s123
      %s138 = sphi 0, %s124
      %s142 = sphi 0, %s142
      %s144 = sphi 0, %s142
      %s145 = sphi 0, %s144
      %s159 = sphi 0, %s145
      %s163 = sphi 0, %s163
      %s165 = sphi 0, %s163
      %s166 = sphi 0, %s165
      %s180 = sphi 0, %s166
      %s184 = sphi 0, %s184
      %s186 = sphi 0, %s184
      %s187 = sphi 0, %s186
      %s201 = sphi 0, %s187
      %s205 = sphi 0, %s205
      %s207 = sphi 0, %s205
      %s208 = sphi 0, %s207
      %s222 = sphi 0, %s208
      %s226 = sphi 0, %s226
      %s228 = sphi 0, %s226
      %s229 = sphi 0, %s228
      %s243 = sphi 0, %s229
      %s247 = sphi 0, %s247
      %s249 = sphi 0, %s247
      %s250 = sphi 0, %s249
      %s264 = sphi 0, %s250
      %s268 = sphi 0, %s268
      %s270 = sphi 0, %s268
      %s271 = sphi 0, %s270
      %s285 = sphi 0, %s271
      %s291 = sphi 0, %s293
      %s294 = sphi 0, %s291
      %s295 = sphi 0, %s294
      %s311 = sphi 0, %s295
    $region4: #{forward.1} parent=1 // loop_header_branch
      %27 = sbr.rel (%p25) target = $region8
    $region5: #{forward.1} parent=1 // loop_body
      %s29 = ssub.s32 %s24, 1
      %s30 = ssub.s32 %s24, 2
      %s31 = sadd.s32 %s24, 1
      %s32 = ssub.s32 %s24, %s31
      %p33 = scmp.eq.s32.totalorder %s32, 0
      %s35 = sadd.s32 %s34, 1
      %s36 = scalar_select %p33, %s34, %s35
      %p39 = pneg %p33
      %p40 = scmp.eq.s32.totalorder %s24, 1
      %p41 = por %p39, %p40
      %p42 = scmp.ne.s32.totalorder %s34, %s37
      %p43 = scmp.eq.s32.totalorder %s24, 0
      %p44 = por %p42, %p43
      %p45 = scmp.ne.s32.totalorder %s34, %s37
      %p46 = scmp.eq.s32.totalorder %s29, 1
      %p47 = por %p45, %p46
      %p48 = scmp.ne.s32.totalorder %s37, %s38
      %p49 = scmp.eq.s32.totalorder %s29, 0
      %p50 = por %p48, %p49
      %p51 = scmp.ne.s32.totalorder %s37, %s38
      %p52 = scmp.eq.s32.totalorder %s30, 1
      %p53 = por %p51, %p52
      %p55 = scmp.ne.s32.totalorder %s38, %s54
      %p56 = scmp.eq.s32.totalorder %s30, 0
      %p57 = por %p55, %p56
      %s59 = sadd.s32 %s58, 1
      %p62 = scmp.eq.s32.totalorder %s24, 1
      %p63 = scmp.ne.s32.totalorder %s58, %s60
      %p64 = scmp.eq.s32.totalorder %s24, 0
      %p65 = por %p63, %p64
      %p66 = scmp.ne.s32.totalorder %s58, %s60
      %p67 = scmp.eq.s32.totalorder %s29, 1
      %p68 = por %p66, %p67
      %p69 = scmp.ne.s32.totalorder %s60, %s61
      %p70 = scmp.eq.s32.totalorder %s29, 0
      %p71 = por %p69, %p70
      %p72 = scmp.ne.s32.totalorder %s60, %s61
      %p73 = scmp.eq.s32.totalorder %s30, 1
      %p74 = por %p72, %p73
      %p76 = scmp.ne.s32.totalorder %s61, %s75
      %p77 = scmp.eq.s32.totalorder %s30, 0
      %p78 = por %p76, %p77
      %s80 = sadd.s32 %s79, 1
      %p83 = scmp.eq.s32.totalorder %s24, 1
      %p84 = scmp.ne.s32.totalorder %s79, %s81
      %p85 = scmp.eq.s32.totalorder %s24, 0
      %p86 = por %p84, %p85
      %p87 = scmp.ne.s32.totalorder %s79, %s81
      %p88 = scmp.eq.s32.totalorder %s29, 1
      %p89 = por %p87, %p88
      %p90 = scmp.ne.s32.totalorder %s81, %s82
      %p91 = scmp.eq.s32.totalorder %s29, 0
      %p92 = por %p90, %p91
      %p93 = scmp.ne.s32.totalorder %s81, %s82
      %p94 = scmp.eq.s32.totalorder %s30, 1
      %p95 = por %p93, %p94
      %p97 = scmp.ne.s32.totalorder %s82, %s96
      %p98 = scmp.eq.s32.totalorder %s30, 0
      %p99 = por %p97, %p98
      %s101 = sadd.s32 %s100, 1
      %p104 = scmp.eq.s32.totalorder %s24, 1
      %p105 = scmp.ne.s32.totalorder %s100, %s102
      %p106 = scmp.eq.s32.totalorder %s24, 0
      %p107 = por %p105, %p106
      %p108 = scmp.ne.s32.totalorder %s100, %s102
      %p109 = scmp.eq.s32.totalorder %s29, 1
      %p110 = por %p108, %p109
      %p111 = scmp.ne.s32.totalorder %s102, %s103
      %p112 = scmp.eq.s32.totalorder %s29, 0
      %p113 = por %p111, %p112
      %p114 = scmp.ne.s32.totalorder %s102, %s103
      %p115 = scmp.eq.s32.totalorder %s30, 1
      %p116 = por %p114, %p115
      %p118 = scmp.ne.s32.totalorder %s103, %s117
      %p119 = scmp.eq.s32.totalorder %s30, 0
      %p120 = por %p118, %p119
      %s122 = sadd.s32 %s121, 1
      %p125 = scmp.eq.s32.totalorder %s24, 1
      %p126 = scmp.ne.s32.totalorder %s121, %s123
      %p127 = scmp.eq.s32.totalorder %s24, 0
      %p128 = por %p126, %p127
      %p129 = scmp.ne.s32.totalorder %s121, %s123
      %p130 = scmp.eq.s32.totalorder %s29, 1
      %p131 = por %p129, %p130
      %p132 = scmp.ne.s32.totalorder %s123, %s124
      %p133 = scmp.eq.s32.totalorder %s29, 0
      %p134 = por %p132, %p133
      %p135 = scmp.ne.s32.totalorder %s123, %s124
      %p136 = scmp.eq.s32.totalorder %s30, 1
      %p137 = por %p135, %p136
      %p139 = scmp.ne.s32.totalorder %s124, %s138
      %p140 = scmp.eq.s32.totalorder %s30, 0
      %p141 = por %p139, %p140
      %s143 = sadd.s32 %s142, 1
      %p146 = scmp.eq.s32.totalorder %s24, 1
      %p147 = scmp.ne.s32.totalorder %s142, %s144
      %p148 = scmp.eq.s32.totalorder %s24, 0
      %p149 = por %p147, %p148
      %p150 = scmp.ne.s32.totalorder %s142, %s144
      %p151 = scmp.eq.s32.totalorder %s29, 1
      %p152 = por %p150, %p151
      %p153 = scmp.ne.s32.totalorder %s144, %s145
      %p154 = scmp.eq.s32.totalorder %s29, 0
      %p155 = por %p153, %p154
      %p156 = scmp.ne.s32.totalorder %s144, %s145
      %p157 = scmp.eq.s32.totalorder %s30, 1
      %p158 = por %p156, %p157
      %p160 = scmp.ne.s32.totalorder %s145, %s159
      %p161 = scmp.eq.s32.totalorder %s30, 0
      %p162 = por %p160, %p161
      %s164 = sadd.s32 %s163, 1
      %p167 = scmp.eq.s32.totalorder %s24, 1
      %p168 = scmp.ne.s32.totalorder %s163, %s165
      %p169 = scmp.eq.s32.totalorder %s24, 0
      %p170 = por %p168, %p169
      %p171 = scmp.ne.s32.totalorder %s163, %s165
      %p172 = scmp.eq.s32.totalorder %s29, 1
      %p173 = por %p171, %p172
      %p174 = scmp.ne.s32.totalorder %s165, %s166
      %p175 = scmp.eq.s32.totalorder %s29, 0
      %p176 = por %p174, %p175
      %p177 = scmp.ne.s32.totalorder %s165, %s166
      %p178 = scmp.eq.s32.totalorder %s30, 1
      %p179 = por %p177, %p178
      %p181 = scmp.ne.s32.totalorder %s166, %s180
      %p182 = scmp.eq.s32.totalorder %s30, 0
      %p183 = por %p181, %p182
      %s185 = sadd.s32 %s184, 1
      %p188 = scmp.eq.s32.totalorder %s24, 1
      %p189 = scmp.ne.s32.totalorder %s184, %s186
      %p190 = scmp.eq.s32.totalorder %s24, 0
      %p191 = por %p189, %p190
      %p192 = scmp.ne.s32.totalorder %s184, %s186
      %p193 = scmp.eq.s32.totalorder %s29, 1
      %p194 = por %p192, %p193
      %p195 = scmp.ne.s32.totalorder %s186, %s187
      %p196 = scmp.eq.s32.totalorder %s29, 0
      %p197 = por %p195, %p196
      %p198 = scmp.ne.s32.totalorder %s186, %s187
      %p199 = scmp.eq.s32.totalorder %s30, 1
      %p200 = por %p198, %p199
      %p202 = scmp.ne.s32.totalorder %s187, %s201
      %p203 = scmp.eq.s32.totalorder %s30, 0
      %p204 = por %p202, %p203
      %s206 = sadd.s32 %s205, 1
      %p209 = scmp.eq.s32.totalorder %s24, 1
      %p210 = scmp.ne.s32.totalorder %s205, %s207
      %p211 = scmp.eq.s32.totalorder %s24, 0
      %p212 = por %p210, %p211
      %p213 = scmp.ne.s32.totalorder %s205, %s207
      %p214 = scmp.eq.s32.totalorder %s29, 1
      %p215 = por %p213, %p214
      %p216 = scmp.ne.s32.totalorder %s207, %s208
      %p217 = scmp.eq.s32.totalorder %s29, 0
      %p218 = por %p216, %p217
      %p219 = scmp.ne.s32.totalorder %s207, %s208
      %p220 = scmp.eq.s32.totalorder %s30, 1
      %p221 = por %p219, %p220
      %p223 = scmp.ne.s32.totalorder %s208, %s222
      %p224 = scmp.eq.s32.totalorder %s30, 0
      %p225 = por %p223, %p224
      %s227 = sadd.s32 %s226, 1
      %p230 = scmp.eq.s32.totalorder %s24, 1
      %p231 = scmp.ne.s32.totalorder %s226, %s228
      %p232 = scmp.eq.s32.totalorder %s24, 0
      %p233 = por %p231, %p232
      %p234 = scmp.ne.s32.totalorder %s226, %s228
      %p235 = scmp.eq.s32.totalorder %s29, 1
      %p236 = por %p234, %p235
      %p237 = scmp.ne.s32.totalorder %s228, %s229
      %p238 = scmp.eq.s32.totalorder %s29, 0
      %p239 = por %p237, %p238
      %p240 = scmp.ne.s32.totalorder %s228, %s229
      %p241 = scmp.eq.s32.totalorder %s30, 1
      %p242 = por %p240, %p241
      %p244 = scmp.ne.s32.totalorder %s229, %s243
      %p245 = scmp.eq.s32.totalorder %s30, 0
      %p246 = por %p244, %p245
      %s248 = sadd.s32 %s247, 1
      %p251 = scmp.eq.s32.totalorder %s24, 1
      %p252 = scmp.ne.s32.totalorder %s247, %s249
      %p253 = scmp.eq.s32.totalorder %s24, 0
      %p254 = por %p252, %p253
      %p255 = scmp.ne.s32.totalorder %s247, %s249
      %p256 = scmp.eq.s32.totalorder %s29, 1
      %p257 = por %p255, %p256
      %p258 = scmp.ne.s32.totalorder %s249, %s250
      %p259 = scmp.eq.s32.totalorder %s29, 0
      %p260 = por %p258, %p259
      %p261 = scmp.ne.s32.totalorder %s249, %s250
      %p262 = scmp.eq.s32.totalorder %s30, 1
      %p263 = por %p261, %p262
      %p265 = scmp.ne.s32.totalorder %s250, %s264
      %p266 = scmp.eq.s32.totalorder %s30, 0
      %p267 = por %p265, %p266
      %s269 = sadd.s32 %s268, 1
      %p272 = scmp.eq.s32.totalorder %s24, 1
      %p273 = scmp.ne.s32.totalorder %s268, %s270
      %p274 = scmp.eq.s32.totalorder %s24, 0
      %p275 = por %p273, %p274
      %p276 = scmp.ne.s32.totalorder %s268, %s270
      %p277 = scmp.eq.s32.totalorder %s29, 1
      %p278 = por %p276, %p277
      %p279 = scmp.ne.s32.totalorder %s270, %s271
      %p280 = scmp.eq.s32.totalorder %s29, 0
      %p281 = por %p279, %p280
      %p282 = scmp.ne.s32.totalorder %s270, %s271
      %p283 = scmp.eq.s32.totalorder %s30, 1
      %p284 = por %p282, %p283
      %p286 = scmp.ne.s32.totalorder %s271, %s285
      %p287 = scmp.eq.s32.totalorder %s30, 0
      %p288 = por %p286, %p287
      %s289 = ssub.s32 %s24, %s31
      %p290 = scmp.eq.s32.totalorder %s289, 0
      %s292 = sadd.s32 %s291, 1
      %s293 = scalar_select %p290, %s291, %s292
      %p296 = pneg %p290
      %p297 = scmp.eq.s32.totalorder %s24, 1
      %p298 = por %p296, %p297
      %p299 = scmp.ne.s32.totalorder %s291, %s294
      %p300 = scmp.eq.s32.totalorder %s24, 0
      %p301 = por %p299, %p300
      %p302 = scmp.ne.s32.totalorder %s291, %s294
      %p303 = scmp.eq.s32.totalorder %s29, 1
      %p304 = por %p302, %p303
      %p305 = scmp.ne.s32.totalorder %s294, %s295
      %p306 = scmp.eq.s32.totalorder %s29, 0
      %p307 = por %p305, %p306
      %p308 = scmp.ne.s32.totalorder %s294, %s295
      %p309 = scmp.eq.s32.totalorder %s30, 1
      %p310 = por %p308, %p309
      %p312 = scmp.ne.s32.totalorder %s295, %s311
      %p313 = scmp.eq.s32.totalorder %s30, 0
      %p314 = por %p312, %p313
      %p315 = scmp.le.s32.totalorder 1, %s24
      %p316 = scmp.lt.s32.totalorder %s24, 3
      %p317 = pnand %p315, %p316
      %p318 = pneg %p317
      // Predicated region
      $region9: #{forward.1} parent=5 // pred_check
        _
      $region10: #{forward.1} parent=5 // pred_check_branch
        %320 = sbr.rel (%p317) target = $region12
      $region11: #{forward.1} parent=5 // pred_region
        %s321 = ssub.s32 %s24, 1
        // Predicated region
        $region13: #{forward.1} parent=11 // pred_check
          %p322 = pneg %p71
        $region14: #{forward.1} parent=11 // pred_check_branch
          %324 = sbr.rel (%p322) target = $region16
        $region15: #{forward.1} parent=11 // pred_region
          %s326 = ssub.s32 512, 512
          %327 = vsyncadd [#allocation5], %s326
          %s328 = sshll.u32 [#allocation4], 4
          %s329 = int_to_ptr.vmem [resolvable:$true] %s328
          %334 = dma.hbm_to_vmem [thread:$0]  %s1, 512, %s329, [#allocation5], 128, 128, 8
        $region16: #{forward.1} parent=11 // pred_fallthru
          _
        // Predicated region
        $region17: #{forward.1} parent=11 // pred_check
          %p335 = pneg %p92
        $region18: #{forward.1} parent=11 // pred_check_branch
          %337 = sbr.rel (%p335) target = $region20
        $region19: #{forward.1} parent=11 // pred_region
          %s339 = ssub.s32 512, 512
          %340 = vsyncadd [#allocation5], %s339
          %s341 = sshll.u32 [#allocation6], 4
          %s342 = int_to_ptr.vmem [resolvable:$true] %s341
          %347 = dma.hbm_to_vmem [thread:$0]  %s2, 512, %s342, [#allocation5], 128, 128, 8
        $region20: #{forward.1} parent=11 // pred_fallthru
          _
        // Predicated region
        $region21: #{forward.1} parent=11 // pred_check
          %p348 = pneg %p113
        $region22: #{forward.1} parent=11 // pred_check_branch
          %350 = sbr.rel (%p348) target = $region24
        $region23: #{forward.1} parent=11 // pred_region
          %s352 = ssub.s32 512, 512
          %353 = vsyncadd [#allocation8], %s352
          %s354 = sshll.u32 [#allocation7], 4
          %s355 = int_to_ptr.vmem [resolvable:$true] %s354
          %360 = dma.hbm_to_vmem [thread:$0]  %s3, 512, %s355, [#allocation8], 128, 128, 8
        $region24: #{forward.1} parent=11 // pred_fallthru
          _
        // Predicated region
        $region25: #{forward.1} parent=11 // pred_check
          %p361 = pneg %p134
        $region26: #{forward.1} parent=11 // pred_check_branch
          %363 = sbr.rel (%p361) target = $region28
        $region27: #{forward.1} parent=11 // pred_region
          %s365 = ssub.s32 16, 16
          %366 = vsyncadd [#allocation8], %s365
          %s368 = sshll.u32 [#allocation9], 4
          %s369 = int_to_ptr.vmem [resolvable:$true] %s368
          %371 = dma.hbm_to_vmem [thread:$0]  %s4, 16, %s369, [#allocation8]
        $region28: #{forward.1} parent=11 // pred_fallthru
          _
        // Predicated region
        $region29: #{forward.1} parent=11 // pred_check
          %p372 = pneg %p155
        $region30: #{forward.1} parent=11 // pred_check_branch
          %374 = sbr.rel (%p372) target = $region32
        $region31: #{forward.1} parent=11 // pred_region
          %s376 = ssub.s32 16, 16
          %377 = vsyncadd [#allocation11], %s376
          %s379 = sshll.u32 [#allocation10], 4
          %s380 = int_to_ptr.vmem [resolvable:$true] %s379
          %382 = dma.hbm_to_vmem [thread:$0]  %s5, 16, %s380, [#allocation11]
        $region32: #{forward.1} parent=11 // pred_fallthru
          _
        // Predicated region
        $region33: #{forward.1} parent=11 // pred_check
          %p383 = pneg %p176
        $region34: #{forward.1} parent=11 // pred_check_branch
          %385 = sbr.rel (%p383) target = $region36
        $region35: #{forward.1} parent=11 // pred_region
          %s387 = ssub.s32 16, 16
          %388 = vsyncadd [#allocation11], %s387
          %s390 = sshll.u32 [#allocation12], 4
          %s391 = int_to_ptr.vmem [resolvable:$true] %s390
          %393 = dma.hbm_to_vmem [thread:$0]  %s6, 16, %s391, [#allocation11]
        $region36: #{forward.1} parent=11 // pred_fallthru
          _
        // Predicated region
        $region37: #{forward.1} parent=11 // pred_check
          %p394 = pneg %p197
        $region38: #{forward.1} parent=11 // pred_check_branch
          %396 = sbr.rel (%p394) target = $region40
        $region39: #{forward.1} parent=11 // pred_region
          _
        $region40: #{forward.1} parent=11 // pred_fallthru
          _
        // Predicated region
        $region41: #{forward.1} parent=11 // pred_check
          %p397 = pneg %p218
        $region42: #{forward.1} parent=11 // pred_check_branch
          %399 = sbr.rel (%p397) target = $region44
        $region43: #{forward.1} parent=11 // pred_region
          _
        $region44: #{forward.1} parent=11 // pred_fallthru
          _
        // Predicated region
        $region45: #{forward.1} parent=11 // pred_check
          %p400 = pneg %p239
        $region46: #{forward.1} parent=11 // pred_check_branch
          %402 = sbr.rel (%p400) target = $region48
        $region47: #{forward.1} parent=11 // pred_region
          _
        $region48: #{forward.1} parent=11 // pred_fallthru
          _
        // Predicated region
        $region49: #{forward.1} parent=11 // pred_check
          %p403 = pneg %p260
        $region50: #{forward.1} parent=11 // pred_check_branch
          %405 = sbr.rel (%p403) target = $region52
        $region51: #{forward.1} parent=11 // pred_region
          _
        $region52: #{forward.1} parent=11 // pred_fallthru
          _
        // Predicated region
        $region53: #{forward.1} parent=11 // pred_check
          %p406 = pneg %p281
        $region54: #{forward.1} parent=11 // pred_check_branch
          %408 = sbr.rel (%p406) target = $region56
        $region55: #{forward.1} parent=11 // pred_region
          _
        $region56: #{forward.1} parent=11 // pred_fallthru
          _
      $region12: #{forward.1} parent=5 // pred_fallthru
        _
      %p409 = scmp.lt.s32.totalorder %s24, 2
      // Predicated region
      $region57: #{forward.1} parent=5 // pred_check
        %p410 = pneg %p409
      $region58: #{forward.1} parent=5 // pred_check_branch
        %412 = sbr.rel (%p410) target = $region60
      $region59: #{forward.1} parent=5 // pred_region
        // Predicated region
        $region61: #{forward.1} parent=59 // pred_check
          %p413 = pneg %p44
        $region62: #{forward.1} parent=59 // pred_check_branch
          %415 = sbr.rel (%p413) target = $region64
        $region63: #{forward.1} parent=59 // pred_region
          %s416 = sand.u32 %s34, 1
          %s417 = scalar_lea.sflag [#allocation3], %s416
          %s418 = sand.u32 %s34, 1
          %s419 = smul.addr %s418, 32
          %s420 = scalar_lea.vmem [#allocation2], %s419
          %s421 = smul.u32 4, %s24
          %s423 = ssub.s32 512, 512
          %424 = vsyncadd %s417, %s423
          %s425 = smul.addr %s421, 128
          %s426 = scalar_lea.hbm %s0, %s425
          %s427 = sshll.u32 %s420, 4
          %s428 = int_to_ptr.vmem [resolvable:$true] %s427
          %433 = dma.hbm_to_vmem [thread:$0]  %s426, 512, %s428, %s417, 128, 128, 8
        $region64: #{forward.1} parent=59 // pred_fallthru
          _
      $region60: #{forward.1} parent=5 // pred_fallthru
        _
      %p434 = scmp.le.s32.totalorder 1, %s24
      %p435 = scmp.lt.s32.totalorder %s24, 3
      %p436 = pnand %p434, %p435
      %p437 = pneg %p436
      // Predicated region
      $region65: #{forward.1} parent=5 // pred_check
        _
      $region66: #{forward.1} parent=5 // pred_check_branch
        %439 = sbr.rel (%p436) target = $region68
      $region67: #{forward.1} parent=5 // pred_region
        %s440 = ssub.s32 %s24, 1
        %s441 = sand.u32 %s37, 1
        %s442 = scalar_lea.sflag [#allocation3], %s441
        %s443 = sand.u32 %s37, 1
        %s444 = smul.addr %s443, 32
        %s445 = scalar_lea.vmem [#allocation2], %s444
        // Predicated region
        $region69: #{forward.1} parent=67 // pred_check
          %p446 = pneg %p50
        $region70: #{forward.1} parent=67 // pred_check_branch
          %448 = sbr.rel (%p446) target = $region72
        $region71: #{forward.1} parent=67 // pred_region
          %449 = dma.done %s442, 512
        $region72: #{forward.1} parent=67 // pred_fallthru
          _
        // Predicated region
        $region73: #{forward.1} parent=67 // pred_check
          %p450 = pneg %p71
        $region74: #{forward.1} parent=67 // pred_check_branch
          %452 = sbr.rel (%p450) target = $region76
        $region75: #{forward.1} parent=67 // pred_region
          %453 = dma.done [#allocation5], 512
        $region76: #{forward.1} parent=67 // pred_fallthru
          _
        // Predicated region
        $region77: #{forward.1} parent=67 // pred_check
          %p454 = pneg %p92
        $region78: #{forward.1} parent=67 // pred_check_branch
          %456 = sbr.rel (%p454) target = $region80
        $region79: #{forward.1} parent=67 // pred_region
          %457 = dma.done [#allocation5], 512
        $region80: #{forward.1} parent=67 // pred_fallthru
          _
        // Predicated region
        $region81: #{forward.1} parent=67 // pred_check
          %p458 = pneg %p113
        $region82: #{forward.1} parent=67 // pred_check_branch
          %460 = sbr.rel (%p458) target = $region84
        $region83: #{forward.1} parent=67 // pred_region
          %461 = dma.done [#allocation8], 512
        $region84: #{forward.1} parent=67 // pred_fallthru
          _
        // Predicated region
        $region85: #{forward.1} parent=67 // pred_check
          %p462 = pneg %p134
        $region86: #{forward.1} parent=67 // pred_check_branch
          %464 = sbr.rel (%p462) target = $region88
        $region87: #{forward.1} parent=67 // pred_region
          %465 = dma.done [#allocation8], 16
        $region88: #{forward.1} parent=67 // pred_fallthru
          _
        // Predicated region
        $region89: #{forward.1} parent=67 // pred_check
          %p466 = pneg %p155
        $region90: #{forward.1} parent=67 // pred_check_branch
          %468 = sbr.rel (%p466) target = $region92
        $region91: #{forward.1} parent=67 // pred_region
          %469 = dma.done [#allocation11], 16
        $region92: #{forward.1} parent=67 // pred_fallthru
          _
        // Predicated region
        $region93: #{forward.1} parent=67 // pred_check
          %p470 = pneg %p176
        $region94: #{forward.1} parent=67 // pred_check_branch
          %472 = sbr.rel (%p470) target = $region96
        $region95: #{forward.1} parent=67 // pred_region
          %473 = dma.done [#allocation11], 16
        $region96: #{forward.1} parent=67 // pred_fallthru
          _
        %s474 = sand.u32 %s37, 1
        %s475 = scalar_lea.sflag [#allocation3], %s474
        %s476 = sand.u32 %s37, 1
        %s477 = smul.addr %s476, 32
        %s478 = scalar_lea.vmem [#allocation2], %s477
        %p479 = pneg %p50
        %p480 = pneg %p47
        %p481 = pneg %p71
        %p482 = pneg %p68
        %p483 = pneg %p92
        %p484 = pneg %p89
        %p485 = pneg %p113
        %p486 = pneg %p110
        %p487 = pneg %p134
        %p488 = pneg %p131
        %p489 = pneg %p155
        %p490 = pneg %p152
        %p491 = pneg %p176
        %p492 = pneg %p173
        %p493 = pneg %p197
        %p494 = pneg %p194
        %p495 = pneg %p218
        %p496 = pneg %p215
        %p497 = pneg %p239
        %p498 = pneg %p236
        %p499 = pneg %p260
        %p500 = pneg %p257
        %p501 = pneg %p281
        %p502 = pneg %p278
        %p503 = pneg %p307
        %p504 = pneg %p304
        %p505 = scmp.lt.s32.totalorder %s29, 1
        %s506 = scalar_select %p505, %s29, 1
        %s507 = smul.addr %s506, 8
        %s508 = scalar_lea.vmem %s12, %s507
        %s509 = smul.u32 4, %s29
        %p510 = scmp.lt.s32.totalorder %s29, 1
        %s511 = scalar_select %p510, %s29, 1
        %s512 = smul.addr %s511, 8
        %s513 = scalar_lea.vmem %s12, %s512
        %v515 = vld [vmem:[%s445] sm:$0xff]
        %v516 = vld [vmem:[%s445 + $0x8] sm:$0xff]
        %v517 = vld [vmem:[%s445 + $0x10] sm:$0xff]
        %v518 = vld [vmem:[%s445 + $0x18] sm:$0xff]
        %v519 = vld [vmem:[#allocation4] sm:$0xff]
        %v520 = vld [vmem:[#allocation4 + $0x8] sm:$0xff]
        %v521 = vld [vmem:[#allocation4 + $0x10] sm:$0xff]
        %v522 = vld [vmem:[#allocation4 + $0x18] sm:$0xff]
        %v523 = vld [vmem:[#allocation9] sm:$0x1]
        %v525 = vlaneseq
        %v526 = vshrl.u32 %v525, 7
        %v527 = vsub.s32 0, %v526
        %v528 = vrot.slane %v523, %v527
        %vm530 = vcmask 261120
        %v532 = vsel %vm530, %v515, 0
        %v535 = vsel %vm530, %v516, 0
        %v538 = vsel %vm530, %v517, 0
        %v541 = vsel %vm530, %v518, 0
        %543 = vmatprep.subr.mxu0 0.0
        %544 = vmatpush1.msra.mxu0 %v519
        %545 = vmatprep.subr.mxu0 0.0
        %546 = vmatpush1.msra.mxu0 %v520
        %547 = vmatprep.subr.mxu0 0.0
        %548 = vmatpush1.msra.mxu0 %v521
        %549 = vmatprep.subr.mxu0 0.0
        %550 = vmatpush1.msra.mxu0 %v522
        %551 = vmatprep.subr.mxu0 0.0
        %552 = vmatpush1.msra.mxu0 0.0
        %553 = vmatprep.subr.mxu0 0.0
        %554 = vmatpush1.msra.mxu0 0.0
        %555 = vmatprep.subr.mxu0 0.0
        %556 = vmatpush1.msra.mxu0 0.0
        %557 = vmatprep.subr.mxu0 0.0
        %558 = vmatpush1.msra.mxu0 0.0
        %559 = vmatprep.subr.mxu0 0.0
        %560 = vmatpush1.msra.mxu0 0.0
        %561 = vmatprep.subr.mxu0 0.0
        %562 = vmatpush1.msra.mxu0 0.0
        %563 = vmatprep.subr.mxu0 0.0
        %564 = vmatpush1.msra.mxu0 0.0
        %565 = vmatprep.subr.mxu0 0.0
        %566 = vmatpush1.msra.mxu0 0.0
        %567 = vmatprep.subr.mxu0 0.0
        %568 = vmatpush1.msra.mxu0 0.0
        %569 = vmatprep.subr.mxu0 0.0
        %570 = vmatpush1.msra.mxu0 0.0
        %571 = vmatprep.subr.mxu0 0.0
        %572 = vmatpush1.msra.mxu0 0.0
        %573 = vmatprep.subr.mxu0 0.0
        %574 = vmatpush1.msra.mxu0 0.0
        %575 = vmatprep.subr.mxu0 0.0
        %576 = vmatpush1.msra.mxu0 0.0
        %577 = vmatprep.subr.mxu0 0.0
        %578 = vmatpush1.msra.mxu0 0.0
        %579 = vmatprep.subr.mxu0 0.0
        %580 = vmatpush1.msra.mxu0 0.0
        %581 = vmatprep.subr.mxu0 0.0
        %582 = vmatpush1.msra.mxu0 0.0
        %583 = vmatprep.subr.mxu0 0.0
        %584 = vmatpush1.msra.mxu0 0.0
        %585 = vmatprep.subr.mxu0 0.0
        %586 = vmatpush1.msra.mxu0 0.0
        %587 = vmatprep.subr.mxu0 0.0
        %588 = vmatpush1.msra.mxu0 0.0
        %589 = vmatprep.subr.mxu0 0.0
        %590 = vmatpush1.msra.mxu0 0.0
        %591 = vmatprep.subr.mxu0 0.0
        %592 = vmatpush1.msra.mxu0 0.0
        %593 = vmatprep.subr.mxu0 0.0
        %594 = vmatpush1.msra.mxu0 0.0
        %595 = vmatprep.subr.mxu0 0.0
        %596 = vmatpush1.msra.mxu0 0.0
        %597 = vmatprep.subr.mxu0 0.0
        %598 = vmatpush1.msra.mxu0 0.0
        %599 = vmatprep.subr.mxu0 0.0
        %600 = vmatpush1.msra.mxu0 0.0
        %601 = vmatprep.subr.mxu0 0.0
        %602 = vmatpush1.msra.mxu0 0.0
        %603 = vmatprep.subr.mxu0 0.0
        %604 = vmatpush1.msra.mxu0 0.0
        %605 = vmatprep.subr.mxu0 0.0
        %606 = vmatpush1.msra.mxu0 0.0
        %607 = vmatprep.mubr.f32.mxu0 0.0
        %608 = vmatmul.mubr.f32.gmra.mrb[0].mxu0 %v532
        %v609 = vpop.f32.mrb[0].mxu0
        %v610 = vadd.f32 %v528, %v609
        %v611 = vpop.f32.mrb[0].mxu0
        %612 = vmatprep.mubr.f32.mxu0 0.0
        %613 = vmatmul.mubr.f32.gmra.mrb[0].mxu0 %v535
        %v614 = vpop.f32.mrb[0].mxu0
        %v615 = vadd.f32 %v528, %v614
        %v616 = vpop.f32.mrb[0].mxu0
        %617 = vmatprep.mubr.f32.mxu0 0.0
        %618 = vmatmul.mubr.f32.gmra.mrb[0].mxu0 %v538
        %v619 = vpop.f32.mrb[0].mxu0
        %v620 = vadd.f32 %v528, %v619
        %v621 = vpop.f32.mrb[0].mxu0
        %622 = vmatprep.mubr.f32.mxu0 0.0
        %623 = vmatmul.mubr.f32.gmra.mrb[0].mxu0 %v541
        %v624 = vpop.f32.mrb[0].mxu0
        %v625 = vadd.f32 %v528, %v624
        %v626 = vpop.f32.mrb[0].mxu0
        %627 = vdwg.mxu0
        %v628 = vld [vmem:[#allocation6] sm:$0xff]
        %v629 = vld [vmem:[#allocation6 + $0x8] sm:$0xff]
        %v630 = vld [vmem:[#allocation6 + $0x10] sm:$0xff]
        %v631 = vld [vmem:[#allocation6 + $0x18] sm:$0xff]
        %v632 = vld [vmem:[#allocation10] sm:$0x1]
        %v634 = vlaneseq
        %v635 = vshrl.u32 %v634, 7
        %v636 = vsub.s32 0, %v635
        %v637 = vrot.slane %v632, %v636
        %639 = vmatprep.subr.mxu0 0.0
        %640 = vmatpush1.msra.mxu0 %v628
        %641 = vmatprep.subr.mxu0 0.0
        %642 = vmatpush1.msra.mxu0 %v629
        %643 = vmatprep.subr.mxu0 0.0
        %644 = vmatpush1.msra.mxu0 %v630
        %645 = vmatprep.subr.mxu0 0.0
        %646 = vmatpush1.msra.mxu0 %v631
        %647 = vmatprep.subr.mxu0 0.0
        %648 = vmatpush1.msra.mxu0 0.0
        %649 = vmatprep.subr.mxu0 0.0
        %650 = vmatpush1.msra.mxu0 0.0
        %651 = vmatprep.subr.mxu0 0.0
        %652 = vmatpush1.msra.mxu0 0.0
        %653 = vmatprep.subr.mxu0 0.0
        %654 = vmatpush1.msra.mxu0 0.0
        %655 = vmatprep.subr.mxu0 0.0
        %656 = vmatpush1.msra.mxu0 0.0
        %657 = vmatprep.subr.mxu0 0.0
        %658 = vmatpush1.msra.mxu0 0.0
        %659 = vmatprep.subr.mxu0 0.0
        %660 = vmatpush1.msra.mxu0 0.0
        %661 = vmatprep.subr.mxu0 0.0
        %662 = vmatpush1.msra.mxu0 0.0
        %663 = vmatprep.subr.mxu0 0.0
        %664 = vmatpush1.msra.mxu0 0.0
        %665 = vmatprep.subr.mxu0 0.0
        %666 = vmatpush1.msra.mxu0 0.0
        %667 = vmatprep.subr.mxu0 0.0
        %668 = vmatpush1.msra.mxu0 0.0
        %669 = vmatprep.subr.mxu0 0.0
        %670 = vmatpush1.msra.mxu0 0.0
        %671 = vmatprep.subr.mxu0 0.0
        %672 = vmatpush1.msra.mxu0 0.0
        %673 = vmatprep.subr.mxu0 0.0
        %674 = vmatpush1.msra.mxu0 0.0
        %675 = vmatprep.subr.mxu0 0.0
        %676 = vmatpush1.msra.mxu0 0.0
        %677 = vmatprep.subr.mxu0 0.0
        %678 = vmatpush1.msra.mxu0 0.0
        %679 = vmatprep.subr.mxu0 0.0
        %680 = vmatpush1.msra.mxu0 0.0
        %681 = vmatprep.subr.mxu0 0.0
        %682 = vmatpush1.msra.mxu0 0.0
        %683 = vmatprep.subr.mxu0 0.0
        %684 = vmatpush1.msra.mxu0 0.0
        %685 = vmatprep.subr.mxu0 0.0
        %686 = vmatpush1.msra.mxu0 0.0
        %687 = vmatprep.subr.mxu0 0.0
        %688 = vmatpush1.msra.mxu0 0.0
        %689 = vmatprep.subr.mxu0 0.0
        %690 = vmatpush1.msra.mxu0 0.0
        %691 = vmatprep.subr.mxu0 0.0
        %692 = vmatpush1.msra.mxu0 0.0
        %693 = vmatprep.subr.mxu0 0.0
        %694 = vmatpush1.msra.mxu0 0.0
        %695 = vmatprep.subr.mxu0 0.0
        %696 = vmatpush1.msra.mxu0 0.0
        %697 = vmatprep.subr.mxu0 0.0
        %698 = vmatpush1.msra.mxu0 0.0
        %699 = vmatprep.subr.mxu0 0.0
        %700 = vmatpush1.msra.mxu0 0.0
        %701 = vmatprep.subr.mxu0 0.0
        %702 = vmatpush1.msra.mxu0 0.0
        %703 = vmatprep.mubr.f32.mxu0 0.0
        %704 = vmatmul.mubr.f32.gmra.mrb[0].mxu0 %v532
        %v705 = vpop.f32.mrb[0].mxu0
        %v706 = vadd.f32 %v637, %v705
        %v707 = vpop.f32.mrb[0].mxu0
        %708 = vmatprep.mubr.f32.mxu0 0.0
        %709 = vmatmul.mubr.f32.gmra.mrb[0].mxu0 %v535
        %v710 = vpop.f32.mrb[0].mxu0
        %v711 = vadd.f32 %v637, %v710
        %v712 = vpop.f32.mrb[0].mxu0
        %713 = vmatprep.mubr.f32.mxu0 0.0
        %714 = vmatmul.mubr.f32.gmra.mrb[0].mxu0 %v538
        %v715 = vpop.f32.mrb[0].mxu0
        %v716 = vadd.f32 %v637, %v715
        %v717 = vpop.f32.mrb[0].mxu0
        %718 = vmatprep.mubr.f32.mxu0 0.0
        %719 = vmatmul.mubr.f32.gmra.mrb[0].mxu0 %v541
        %v720 = vpop.f32.mrb[0].mxu0
        %v721 = vadd.f32 %v637, %v720
        %v722 = vpop.f32.mrb[0].mxu0
        %723 = vdwg.mxu0
        %v724 = vld [vmem:[#allocation7] sm:$0xff]
        %v725 = vld [vmem:[#allocation7 + $0x8] sm:$0xff]
        %v726 = vld [vmem:[#allocation7 + $0x10] sm:$0xff]
        %v727 = vld [vmem:[#allocation7 + $0x18] sm:$0xff]
        %v728 = vld [vmem:[#allocation12] sm:$0x1]
        %v730 = vlaneseq
        %v731 = vshrl.u32 %v730, 7
        %v732 = vsub.s32 0, %v731
        %v733 = vrot.slane %v728, %v732
        %735 = vmatprep.subr.mxu0 0.0
        %736 = vmatpush1.msra.mxu0 %v724
        %737 = vmatprep.subr.mxu0 0.0
        %738 = vmatpush1.msra.mxu0 %v725
        %739 = vmatprep.subr.mxu0 0.0
        %740 = vmatpush1.msra.mxu0 %v726
        %741 = vmatprep.subr.mxu0 0.0
        %742 = vmatpush1.msra.mxu0 %v727
        %743 = vmatprep.subr.mxu0 0.0
        %744 = vmatpush1.msra.mxu0 0.0
        %745 = vmatprep.subr.mxu0 0.0
        %746 = vmatpush1.msra.mxu0 0.0
        %747 = vmatprep.subr.mxu0 0.0
        %748 = vmatpush1.msra.mxu0 0.0
        %749 = vmatprep.subr.mxu0 0.0
        %750 = vmatpush1.msra.mxu0 0.0
        %751 = vmatprep.subr.mxu0 0.0
        %752 = vmatpush1.msra.mxu0 0.0
        %753 = vmatprep.subr.mxu0 0.0
        %754 = vmatpush1.msra.mxu0 0.0
        %755 = vmatprep.subr.mxu0 0.0
        %756 = vmatpush1.msra.mxu0 0.0
        %757 = vmatprep.subr.mxu0 0.0
        %758 = vmatpush1.msra.mxu0 0.0
        %759 = vmatprep.subr.mxu0 0.0
        %760 = vmatpush1.msra.mxu0 0.0
        %761 = vmatprep.subr.mxu0 0.0
        %762 = vmatpush1.msra.mxu0 0.0
        %763 = vmatprep.subr.mxu0 0.0
        %764 = vmatpush1.msra.mxu0 0.0
        %765 = vmatprep.subr.mxu0 0.0
        %766 = vmatpush1.msra.mxu0 0.0
        %767 = vmatprep.subr.mxu0 0.0
        %768 = vmatpush1.msra.mxu0 0.0
        %769 = vmatprep.subr.mxu0 0.0
        %770 = vmatpush1.msra.mxu0 0.0
        %771 = vmatprep.subr.mxu0 0.0
        %772 = vmatpush1.msra.mxu0 0.0
        %773 = vmatprep.subr.mxu0 0.0
        %774 = vmatpush1.msra.mxu0 0.0
        %775 = vmatprep.subr.mxu0 0.0
        %776 = vmatpush1.msra.mxu0 0.0
        %777 = vmatprep.subr.mxu0 0.0
        %778 = vmatpush1.msra.mxu0 0.0
        %779 = vmatprep.subr.mxu0 0.0
        %780 = vmatpush1.msra.mxu0 0.0
        %781 = vmatprep.subr.mxu0 0.0
        %782 = vmatpush1.msra.mxu0 0.0
        %783 = vmatprep.subr.mxu0 0.0
        %784 = vmatpush1.msra.mxu0 0.0
        %785 = vmatprep.subr.mxu0 0.0
        %786 = vmatpush1.msra.mxu0 0.0
        %787 = vmatprep.subr.mxu0 0.0
        %788 = vmatpush1.msra.mxu0 0.0
        %789 = vmatprep.subr.mxu0 0.0
        %790 = vmatpush1.msra.mxu0 0.0
        %791 = vmatprep.subr.mxu0 0.0
        %792 = vmatpush1.msra.mxu0 0.0
        %793 = vmatprep.subr.mxu0 0.0
        %794 = vmatpush1.msra.mxu0 0.0
        %795 = vmatprep.subr.mxu0 0.0
        %796 = vmatpush1.msra.mxu0 0.0
        %797 = vmatprep.subr.mxu0 0.0
        %798 = vmatpush1.msra.mxu0 0.0
        %799 = vmatprep.mubr.f32.mxu0 0.0
        %800 = vmatmul.mubr.f32.gmra.mrb[0].mxu0 %v532
        %v801 = vpop.f32.mrb[0].mxu0
        %v802 = vadd.f32 %v733, %v801
        %v803 = vpop.f32.mrb[0].mxu0
        %804 = vmatprep.mubr.f32.mxu0 0.0
        %805 = vmatmul.mubr.f32.gmra.mrb[0].mxu0 %v535
        %v806 = vpop.f32.mrb[0].mxu0
        %v807 = vadd.f32 %v733, %v806
        %v808 = vpop.f32.mrb[0].mxu0
        %809 = vmatprep.mubr.f32.mxu0 0.0
        %810 = vmatmul.mubr.f32.gmra.mrb[0].mxu0 %v538
        %v811 = vpop.f32.mrb[0].mxu0
        %v812 = vadd.f32 %v733, %v811
        %v813 = vpop.f32.mrb[0].mxu0
        %814 = vmatprep.mubr.f32.mxu0 0.0
        %815 = vmatmul.mubr.f32.gmra.mrb[0].mxu0 %v541
        %v816 = vpop.f32.mrb[0].mxu0
        %v817 = vadd.f32 %v733, %v816
        %v818 = vpop.f32.mrb[0].mxu0
        %819 = vdwg.mxu0
        %821 = vrot.lane.b32.xlu0 %v615, 32
        %v822 = vpop.permute.xlu0 %821
        %825 = vrot.lane.b32.xlu0 %v620, 64
        %v826 = vpop.permute.xlu0 %825
        %829 = vrot.lane.b32.xlu0 %v625, 96
        %v830 = vpop.permute.xlu0 %829
        %v832 = vsel %vm530, %v610, %v822
        %vm833 = vcmask 523264
        %v834 = vsel %vm833, %v832, %v826
        %vm835 = vcmask 785408
        %v836 = vsel %vm835, %v834, %v830
        %v837 = vpack.c.bf16 %v836, %v836
        %839 = vrot.lane.b32.xlu0 %v711, 32
        %v840 = vpop.permute.xlu0 %839
        %843 = vrot.lane.b32.xlu0 %v716, 64
        %v844 = vpop.permute.xlu0 %843
        %847 = vrot.lane.b32.xlu0 %v721, 96
        %v848 = vpop.permute.xlu0 %847
        %v850 = vsel %vm530, %v706, %v840
        %v851 = vsel %vm833, %v850, %v844
        %v852 = vsel %vm835, %v851, %v848
        %v853 = vpack.c.bf16 %v852, %v852
        %v854 = vld [vmem:[%s9] sm:$0xf]
        %v855 = vld [vmem:[%s9 + $0x4] sm:$0xf]
        %v858 = vunpack.c.l.b16 %v854
        %v859 = vunpack.c.l.b16 %v855
        %v860 = vpack.c.b16 %v859, %v858
        %vm861 = vcmask 64512
        %v863 = vsel %vm861, %v860, 0
        %vm865 = vcmask 1043456
        %v867 = vsel %vm865, %v837, 0
        %869 = vmatprep.subr.bf16.mxu0 0
        %870 = vmatpush1.bf16.msra.mxu0 %v867
        %871 = vmatprep.subr.bf16.mxu0 0
        %872 = vmatpush1.bf16.msra.mxu0 0
        %873 = vmatprep.subr.bf16.mxu0 0
        %874 = vmatpush1.bf16.msra.mxu0 0
        %875 = vmatprep.subr.bf16.mxu0 0
        %876 = vmatpush1.bf16.msra.mxu0 0
        %877 = vmatprep.subr.bf16.mxu0 0
        %878 = vmatpush1.bf16.msra.mxu0 0
        %879 = vmatprep.subr.bf16.mxu0 0
        %880 = vmatpush1.bf16.msra.mxu0 0
        %881 = vmatprep.subr.bf16.mxu0 0
        %882 = vmatpush1.bf16.msra.mxu0 0
        %883 = vmatprep.subr.bf16.mxu0 0
        %884 = vmatpush1.bf16.msra.mxu0 0
        %885 = vmatprep.subr.bf16.mxu0 0
        %886 = vmatpush1.bf16.msra.mxu0 0
        %887 = vmatprep.subr.bf16.mxu0 0
        %888 = vmatpush1.bf16.msra.mxu0 0
        %889 = vmatprep.subr.bf16.mxu0 0
        %890 = vmatpush1.bf16.msra.mxu0 0
        %891 = vmatprep.subr.bf16.mxu0 0
        %892 = vmatpush1.bf16.msra.mxu0 0
        %893 = vmatprep.subr.bf16.mxu0 0
        %894 = vmatpush1.bf16.msra.mxu0 0
        %895 = vmatprep.subr.bf16.mxu0 0
        %896 = vmatpush1.bf16.msra.mxu0 0
        %897 = vmatprep.subr.bf16.mxu0 0
        %898 = vmatpush1.bf16.msra.mxu0 0
        %899 = vmatprep.subr.bf16.mxu0 0
        %900 = vmatpush1.bf16.msra.mxu0 0
        %901 = vmatprep.mubr.bf16.mxu0 0
        %902 = vmatmul.mubr.bf16.gmra.mrb[0].mxu0 %v863
        %v903 = vpop.f32.mrb[0].mxu0
        %v904 = vadd.f32 0.0, %v903
        %v905 = vpop.f32.mrb[0].mxu0
        %v906 = vpop.f32.mrb[0].mxu0
        %v907 = vadd.f32 0.0, %v906
        %v908 = vpop.f32.mrb[0].mxu0
        %909 = vdwg.mxu0
        %v911 = vsel %vm865, %v853, 0
        %913 = vmatprep.subr.bf16.mxu0 0
        %914 = vmatpush1.bf16.msra.mxu0 %v911
        %915 = vmatprep.subr.bf16.mxu0 0
        %916 = vmatpush1.bf16.msra.mxu0 0
        %917 = vmatprep.subr.bf16.mxu0 0
        %918 = vmatpush1.bf16.msra.mxu0 0
        %919 = vmatprep.subr.bf16.mxu0 0
        %920 = vmatpush1.bf16.msra.mxu0 0
        %921 = vmatprep.subr.bf16.mxu0 0
        %922 = vmatpush1.bf16.msra.mxu0 0
        %923 = vmatprep.subr.bf16.mxu0 0
        %924 = vmatpush1.bf16.msra.mxu0 0
        %925 = vmatprep.subr.bf16.mxu0 0
        %926 = vmatpush1.bf16.msra.mxu0 0
        %927 = vmatprep.subr.bf16.mxu0 0
        %928 = vmatpush1.bf16.msra.mxu0 0
        %929 = vmatprep.subr.bf16.mxu0 0
        %930 = vmatpush1.bf16.msra.mxu0 0
        %931 = vmatprep.subr.bf16.mxu0 0
        %932 = vmatpush1.bf16.msra.mxu0 0
        %933 = vmatprep.subr.bf16.mxu0 0
        %934 = vmatpush1.bf16.msra.mxu0 0
        %935 = vmatprep.subr.bf16.mxu0 0
        %936 = vmatpush1.bf16.msra.mxu0 0
        %937 = vmatprep.subr.bf16.mxu0 0
        %938 = vmatpush1.bf16.msra.mxu0 0
        %939 = vmatprep.subr.bf16.mxu0 0
        %940 = vmatpush1.bf16.msra.mxu0 0
        %941 = vmatprep.subr.bf16.mxu0 0
        %942 = vmatpush1.bf16.msra.mxu0 0
        %943 = vmatprep.subr.bf16.mxu0 0
        %944 = vmatpush1.bf16.msra.mxu0 0
        %945 = vmatprep.mubr.bf16.mxu0 0
        %946 = vmatmul.mubr.bf16.gmra.mrb[0].mxu0 %v863
        %v947 = vpop.f32.mrb[0].mxu0
        %v948 = vadd.f32 0.0, %v947
        %v949 = vpop.f32.mrb[0].mxu0
        %v950 = vpop.f32.mrb[0].mxu0
        %v951 = vadd.f32 0.0, %v950
        %v952 = vpop.f32.mrb[0].mxu0
        %953 = vdwg.mxu0
        %v954 = vmul.f32 %v904, %v948
        %v955 = vmul.f32 %v907, %v951
        %v956 = vadd.f32 %v954, %v955
        %v957 = vmul.f32 %v904, %v951
        %v958 = vmul.f32 %v907, %v948
        %v959 = vsub.f32 %v957, %v958
        %v960 = vpack.c.bf16 %v959, %v956
        %v961 = vld [vmem:[%s10] sm:$0xf]
        %vm962 = vcmask 130048
        %v964 = vsel %vm962, %v961, 0
        %966 = vmatprep.subr.bf16.mxu0 0
        %967 = vmatpush1.bf16.msra.mxu0 %v960
        %968 = vmatprep.subr.bf16.mxu0 0
        %969 = vmatpush1.bf16.msra.mxu0 0
        %970 = vmatprep.subr.bf16.mxu0 0
        %971 = vmatpush1.bf16.msra.mxu0 0
        %972 = vmatprep.subr.bf16.mxu0 0
        %973 = vmatpush1.bf16.msra.mxu0 0
        %974 = vmatprep.subr.bf16.mxu0 0
        %975 = vmatpush1.bf16.msra.mxu0 0
        %976 = vmatprep.subr.bf16.mxu0 0
        %977 = vmatpush1.bf16.msra.mxu0 0
        %978 = vmatprep.subr.bf16.mxu0 0
        %979 = vmatpush1.bf16.msra.mxu0 0
        %980 = vmatprep.subr.bf16.mxu0 0
        %981 = vmatpush1.bf16.msra.mxu0 0
        %982 = vmatprep.subr.bf16.mxu0 0
        %983 = vmatpush1.bf16.msra.mxu0 0
        %984 = vmatprep.subr.bf16.mxu0 0
        %985 = vmatpush1.bf16.msra.mxu0 0
        %986 = vmatprep.subr.bf16.mxu0 0
        %987 = vmatpush1.bf16.msra.mxu0 0
        %988 = vmatprep.subr.bf16.mxu0 0
        %989 = vmatpush1.bf16.msra.mxu0 0
        %990 = vmatprep.subr.bf16.mxu0 0
        %991 = vmatpush1.bf16.msra.mxu0 0
        %992 = vmatprep.subr.bf16.mxu0 0
        %993 = vmatpush1.bf16.msra.mxu0 0
        %994 = vmatprep.subr.bf16.mxu0 0
        %995 = vmatpush1.bf16.msra.mxu0 0
        %996 = vmatprep.subr.bf16.mxu0 0
        %997 = vmatpush1.bf16.msra.mxu0 0
        %998 = vmatprep.mubr.bf16.mxu0 0
        %999 = vmatmul.mubr.bf16.gmra.mrb[0].mxu0 %v964
        %v1000 = vpop.f32.mrb[0].mxu0
        %v1001 = vadd.f32 0.0, %v1000
        %v1002 = vpop.f32.mrb[0].mxu0
        %v1003 = vpop.f32.mrb[0].mxu0
        %v1004 = vpop.f32.mrb[0].mxu0
        %1005 = vdwg.mxu0
        %v1006 = vld [vmem:[%s11] sm:$0x1]
        %v1008 = vlaneseq
        %v1009 = vshrl.u32 %v1008, 7
        %v1010 = vsub.s32 0, %v1009
        %v1011 = vrot.slane %v1006, %v1010
        %v1013 = vmul.f32 %v1001, %v1011
        %v1014 = vrot.slane %v1013, 4
        %v1015 = vmax.f32 %v1013, %v1014
        %v1016 = vrot.slane %v1015, 2
        %v1017 = vmax.f32 %v1015, %v1016
        %v1018 = vrot.slane %v1017, 1
        %v1019 = vmax.f32 %v1017, %v1018
        %v1020 = vsub.f32 %v1013, %v1019
        %v1021 = vmul.f32 %v1020, 1.442695
        %v1022 = vpow.pop %v1021
        %v1023 = vrot.slane %v1022, 4
        %v1024 = vadd.f32 %v1022, %v1023
        %v1025 = vrot.slane %v1024, 2
        %v1026 = vadd.f32 %v1024, %v1025
        %v1027 = vrot.slane %v1026, 1
        %v1028 = vadd.f32 %v1026, %v1027
        %v1029 = vrcp.pop %v1028
        %v1030 = vmul.f32 %v1022, %v1029
        %1032 = vrot.lane.b32.xlu0 %v1030, 96
        %v1033 = vpop.permute.xlu0 %1032
        %1035 = vrot.lane.b32.xlu0 %v1030, 64
        %v1036 = vpop.permute.xlu0 %1035
        %1038 = vrot.lane.b32.xlu0 %v1030, 32
        %v1039 = vpop.permute.xlu0 %1038
        %v1041 = vmul.f32 %v1030, %v802
        %v1042 = vmul.f32 %v1033, %v807
        %v1043 = vmul.f32 %v1036, %v812
        %v1044 = vmul.f32 %v1039, %v817
        %v1045 = vld [vmem:[%s7] sm:$0xff]
        %v1046 = vld [vmem:[%s7 + $0x8] sm:$0xff]
        %v1047 = vld [vmem:[%s7 + $0x10] sm:$0xff]
        %v1048 = vld [vmem:[%s7 + $0x18] sm:$0xff]
        %v1049 = vld [vmem:[%s8] sm:$0x1]
        %v1051 = vlaneseq
        %v1052 = vshrl.u32 %v1051, 7
        %v1053 = vsub.s32 0, %v1052
        %v1054 = vrot.slane %v1049, %v1053
        %v1057 = vsel %vm530, %v1041, 0
        %v1060 = vsel %vm530, %v1042, 0
        %v1063 = vsel %vm530, %v1043, 0
        %v1066 = vsel %vm530, %v1044, 0
        %1068 = vmatprep.subr.mxu0 0.0
        %1069 = vmatpush1.msra.mxu0 %v1045
        %1070 = vmatprep.subr.mxu0 0.0
        %1071 = vmatpush1.msra.mxu0 %v1046
        %1072 = vmatprep.subr.mxu0 0.0
        %1073 = vmatpush1.msra.mxu0 %v1047
        %1074 = vmatprep.subr.mxu0 0.0
        %1075 = vmatpush1.msra.mxu0 %v1048
        %1076 = vmatprep.subr.mxu0 0.0
        %1077 = vmatpush1.msra.mxu0 0.0
        %1078 = vmatprep.subr.mxu0 0.0
        %1079 = vmatpush1.msra.mxu0 0.0
        %1080 = vmatprep.subr.mxu0 0.0
        %1081 = vmatpush1.msra.mxu0 0.0
        %1082 = vmatprep.subr.mxu0 0.0
        %1083 = vmatpush1.msra.mxu0 0.0
        %1084 = vmatprep.subr.mxu0 0.0
        %1085 = vmatpush1.msra.mxu0 0.0
        %1086 = vmatprep.subr.mxu0 0.0
        %1087 = vmatpush1.msra.mxu0 0.0
        %1088 = vmatprep.subr.mxu0 0.0
        %1089 = vmatpush1.msra.mxu0 0.0
        %1090 = vmatprep.subr.mxu0 0.0
        %1091 = vmatpush1.msra.mxu0 0.0
        %1092 = vmatprep.subr.mxu0 0.0
        %1093 = vmatpush1.msra.mxu0 0.0
        %1094 = vmatprep.subr.mxu0 0.0
        %1095 = vmatpush1.msra.mxu0 0.0
        %1096 = vmatprep.subr.mxu0 0.0
        %1097 = vmatpush1.msra.mxu0 0.0
        %1098 = vmatprep.subr.mxu0 0.0
        %1099 = vmatpush1.msra.mxu0 0.0
        %1100 = vmatprep.subr.mxu0 0.0
        %1101 = vmatpush1.msra.mxu0 0.0
        %1102 = vmatprep.subr.mxu0 0.0
        %1103 = vmatpush1.msra.mxu0 0.0
        %1104 = vmatprep.subr.mxu0 0.0
        %1105 = vmatpush1.msra.mxu0 0.0
        %1106 = vmatprep.subr.mxu0 0.0
        %1107 = vmatpush1.msra.mxu0 0.0
        %1108 = vmatprep.subr.mxu0 0.0
        %1109 = vmatpush1.msra.mxu0 0.0
        %1110 = vmatprep.subr.mxu0 0.0
        %1111 = vmatpush1.msra.mxu0 0.0
        %1112 = vmatprep.subr.mxu0 0.0
        %1113 = vmatpush1.msra.mxu0 0.0
        %1114 = vmatprep.subr.mxu0 0.0
        %1115 = vmatpush1.msra.mxu0 0.0
        %1116 = vmatprep.subr.mxu0 0.0
        %1117 = vmatpush1.msra.mxu0 0.0
        %1118 = vmatprep.subr.mxu0 0.0
        %1119 = vmatpush1.msra.mxu0 0.0
        %1120 = vmatprep.subr.mxu0 0.0
        %1121 = vmatpush1.msra.mxu0 0.0
        %1122 = vmatprep.subr.mxu0 0.0
        %1123 = vmatpush1.msra.mxu0 0.0
        %1124 = vmatprep.subr.mxu0 0.0
        %1125 = vmatpush1.msra.mxu0 0.0
        %1126 = vmatprep.subr.mxu0 0.0
        %1127 = vmatpush1.msra.mxu0 0.0
        %1128 = vmatprep.subr.mxu0 0.0
        %1129 = vmatpush1.msra.mxu0 0.0
        %1130 = vmatprep.subr.mxu0 0.0
        %1131 = vmatpush1.msra.mxu0 0.0
        %1132 = vmatprep.mubr.f32.mxu0 0.0
        %1133 = vmatmul.mubr.f32.gmra.mrb[0].mxu0 %v1057
        %v1134 = vpop.f32.mrb[0].mxu0
        %v1135 = vadd.f32 %v1054, %v1134
        %v1136 = vpop.f32.mrb[0].mxu0
        %1137 = vmatprep.mubr.f32.mxu0 0.0
        %1138 = vmatmul.mubr.f32.gmra.mrb[0].mxu0 %v1060
        %v1139 = vpop.f32.mrb[0].mxu0
        %v1140 = vadd.f32 %v1054, %v1139
        %v1141 = vpop.f32.mrb[0].mxu0
        %1142 = vmatprep.mubr.f32.mxu0 0.0
        %1143 = vmatmul.mubr.f32.gmra.mrb[0].mxu0 %v1063
        %v1144 = vpop.f32.mrb[0].mxu0
        %v1145 = vadd.f32 %v1054, %v1144
        %v1146 = vpop.f32.mrb[0].mxu0
        %1147 = vmatprep.mubr.f32.mxu0 0.0
        %1148 = vmatmul.mubr.f32.gmra.mrb[0].mxu0 %v1066
        %v1149 = vpop.f32.mrb[0].mxu0
        %v1150 = vadd.f32 %v1054, %v1149
        %v1151 = vpop.f32.mrb[0].mxu0
        %1152 = vdwg.mxu0
        %1154 = vrot.lane.b32.xlu0 %v1140, 32
        %v1155 = vpop.permute.xlu0 %1154
        %1158 = vrot.lane.b32.xlu0 %v1145, 64
        %v1159 = vpop.permute.xlu0 %1158
        %1162 = vrot.lane.b32.xlu0 %v1150, 96
        %v1163 = vpop.permute.xlu0 %1162
        %v1165 = vsel %vm530, %v1135, %v1155
        %v1166 = vsel %vm833, %v1165, %v1159
        %v1167 = vsel %vm835, %v1166, %v1163
        %1168 = vst [vmem:[%s513] sm:$0xff] %v1167
        %p1169 = scmp.lt.s32.totalorder %s29, 1
        %s1170 = scalar_select %p1169, %s29, 1
        %s1171 = smul.addr %s1170, 8
        %s1172 = scalar_lea.vmem %s12, %s1171
        // Predicated region
        $region97: #{forward.1} parent=67 // pred_check
          %p1173 = pneg %p304
        $region98: #{forward.1} parent=67 // pred_check_branch
          %1175 = sbr.rel (%p1173) target = $region100
        $region99: #{forward.1} parent=67 // pred_region
          _
        $region100: #{forward.1} parent=67 // pred_fallthru
          _
      $region68: #{forward.1} parent=5 // pred_fallthru
        _
      %p1176 = scmp.le.s32.totalorder 2, %s24
      // Predicated region
      $region101: #{forward.1} parent=5 // pred_check
        %p1177 = pneg %p1176
      $region102: #{forward.1} parent=5 // pred_check_branch
        %1179 = sbr.rel (%p1177) target = $region104
      $region103: #{forward.1} parent=5 // pred_region
        %s1180 = ssub.s32 %s24, 2
        // Predicated region
        $region105: #{forward.1} parent=103 // pred_check
          %p1181 = pneg %p310
        $region106: #{forward.1} parent=103 // pred_check_branch
          %1183 = sbr.rel (%p1181) target = $region108
        $region107: #{forward.1} parent=103 // pred_region
          %p1184 = scmp.lt.s32.totalorder %s30, 1
          %s1185 = scalar_select %p1184, %s30, 1
          %s1186 = smul.addr %s1185, 8
          %s1187 = scalar_lea.vmem %s12, %s1186
        $region108: #{forward.1} parent=103 // pred_fallthru
          _
      $region104: #{forward.1} parent=5 // pred_fallthru
        _
    $region6: #{forward.1} parent=1 // loop_footer
      %s28 = sadd.s32 1, %s24
    $region7: #{forward.1} parent=1 // loop_footer_branch
      %23 = sbr.rel target = $region3
    $region8: #{forward.1} parent=1 // loop_exit
      _
    %1188 = vsyncpa [#allocation3], 1
    %s1189 = scalar_lea.sflag [#allocation3], 1
    %1190 = vsyncpa %s1189, 1
    %1191 = vsyncpa [#allocation5], 1
    %1192 = vsyncpa [#allocation8], 1
    %1193 = vsyncpa [#allocation11], 1

</llo_original>
